<compile_context>
chip_gen: v5e
topology: v5e:2x2
jax: 0.10.0
libtpu: 0.0.40
codegen_flags: <defaults>
</compile_context>

<pallas_src>
import functools

import jax
import jax.numpy as jnp
from jax.experimental import pallas as pl
from jax.experimental.pallas import tpu as pltpu


_LANES = 512            # lane-dense slab width (multiple of 128)
_MAX_TILE_ROWS = 2048   # (2048, 512) f32 tile = 4 MiB per input per buffer
_ROW_ALIGN = 8          # f32 sublane packing; slab rows kept a multiple of 8


def _round_up(x, m):
    return (x + m - 1) // m * m


def _kps_mse_smooth_kernel(pred_ref, gt_ref, valid_ref, partial_ref, *,
                           threshold, rows_valid, tile_rows, tiles_per_split,
                           need_row_mask):
    split = pl.program_id(0)   # "parallel" axis (megacore shard on v7x)
    step = pl.program_id(1)    # "arbitrary" (serialized accumulation) axis

    # Zero this split's resident partial accumulator on its first step.
    @pl.when(step == 0)
    def _():
        partial_ref[...] = jnp.zeros_like(partial_ref)

    pred = pred_ref[...].astype(jnp.float32)     # (tile_rows, LANES)
    gt = gt_ref[...].astype(jnp.float32)
    valid = valid_ref[...].astype(jnp.float32)   # int8 {0,1} -> f32

    diff = (gt - pred) ** 2 * valid

    if need_row_mask:
        # The last logical tile may extend past the slab (the clamped DMA
        # leaves stale data in the unfilled VMEM rows) and the megacore split
        # may contain a fully out-of-range duplicate tile; mask both against
        # the true row count so garbage (possibly NaN/inf) rows contribute 0.
        tile_idx = split * tiles_per_split + step
        row0 = tile_idx * tile_rows
        row_ids = row0 + jax.lax.broadcasted_iota(jnp.int32, (tile_rows, 1), 0)
        diff = jnp.where(row_ids < rows_valid, diff, 0.0)

    thr = jnp.float32(threshold)
    thr_pow = jnp.float32(float(threshold) ** 0.9)
    # diff[diff > thr] = diff[diff > thr] ** 0.1 * thr ** 0.9.  Clamp the pow
    # input: both where-branches are evaluated, and pow(0, 0.1) would
    # otherwise route log(0) = -inf through the EUP on masked elements.
    smoothed = jnp.where(
        diff > thr,
        jnp.power(jnp.maximum(diff, thr), jnp.float32(0.1)) * thr_pow,
        diff,
    )

    # Reduce only along the row-group axis (pure VPU adds, no cross-lane XLU
    # work in the hot loop); the final (8, LANES) -> scalar reduction happens
    # once in the wrapper on a tiny array.
    partial_ref[...] += smoothed.reshape(tile_rows // 8, 8, _LANES).sum(axis=0)


def keypoints_mse_smooth_loss(keypoints_pred, keypoints_gt,
                              keypoints_binary_validity, threshold=400,
                              max_tile_rows=_MAX_TILE_ROWS):
    """JAX/Pallas equivalent of KeypointsMSESmoothLoss.forward.

    keypoints_pred / keypoints_gt: (..., n_joints, D)
    keypoints_binary_validity:     (..., n_joints, 1), binary {0, 1}
    """
    dimension = keypoints_pred.shape[-1]

    # Denominator from the compact validity (D x smaller than streaming it
    # through the kernel):  dimension * max(1, sum(validity)).
    sum_valid = jnp.sum(keypoints_binary_validity.astype(jnp.float32))
    denom = jnp.float32(dimension) * jnp.maximum(jnp.float32(1.0), sum_valid)

    # ---- lane-dense [rows, LANES] slab -------------------------------------
    pred_flat = keypoints_pred.reshape(-1)                   # free reshape
    gt_flat = keypoints_gt.reshape(-1)
    # Binary validity streamed as int8: 4x less HBM traffic than f32.
    valid_flat = jnp.broadcast_to(
        keypoints_binary_validity.astype(jnp.int8), keypoints_pred.shape
    ).reshape(-1)

    total = pred_flat.shape[0]
    padded_total = _round_up(total, _ROW_ALIGN * _LANES)
    pad = padded_total - total
    if pad:
        # Only taken when total isn't a multiple of 8*LANES; zero padding
        # contributes 0 to the sum (valid = 0 and diff = 0 <= threshold).
        # TODO(synk): a truly copy-free ragged tail would need a 1-D /
        # manual-DMA path; a prefix slice costs the same single streaming
        # pass as this pad, so we pad (< 4096 elements) instead.
        pred_flat = jnp.pad(pred_flat, (0, pad))
        gt_flat = jnp.pad(gt_flat, (0, pad))
        valid_flat = jnp.pad(valid_flat, (0, pad))

    rows = padded_total // _LANES                             # multiple of 8
    pred2d = pred_flat.reshape(rows, _LANES)
    gt2d = gt_flat.reshape(rows, _LANES)
    valid2d = valid_flat.reshape(rows, _LANES)

    # Tile rows: full array when it fits (full-dim blocks are always legal),
    # otherwise a large multiple of 32 (int8/bf16 sublane packing) so each
    # f32 input tile is ~4 MiB.
    if rows <= max_tile_rows:
        tile_rows = rows
    else:
        tile_rows = max(32, (max_tile_rows // 32) * 32)
    num_tiles = pl.cdiv(rows, tile_rows)

    # Shard tiles across 2 TensorCores (v7x megacore); on 1-TC v5e/v6e the
    # "parallel" axis just runs sequentially with identical semantics.
    n_split = 2 if num_tiles >= 2 else 1
    tiles_per_split = pl.cdiv(num_tiles, n_split)
    covered_rows = n_split * tiles_per_split * tile_rows
    need_row_mask = covered_rows > rows

    def in_index_map(c, i):
        # Clamp so the DMA never starts past the slab; the in-kernel row mask
        # zeroes any duplicated / partial tile's contribution.  A repeated
        # index on consecutive steps also lets the pipeline skip the re-fetch.
        return (jnp.minimum(c * tiles_per_split + i, num_tiles - 1), 0)

    kernel = functools.partial(
        _kps_mse_smooth_kernel,
        threshold=threshold, rows_valid=rows, tile_rows=tile_rows,
        tiles_per_split=tiles_per_split, need_row_mask=need_row_mask)

    partials = pl.pallas_call(
        kernel,
        out_shape=jax.ShapeDtypeStruct((n_split * 8, _LANES), jnp.float32),
        grid=(n_split, tiles_per_split),
        in_specs=[
            pl.BlockSpec((tile_rows, _LANES), in_index_map),
            pl.BlockSpec((tile_rows, _LANES), in_index_map),
            pl.BlockSpec((tile_rows, _LANES), in_index_map),
        ],
        out_specs=pl.BlockSpec((8, _LANES), lambda c, i: (c, 0)),
        compiler_params=pltpu.CompilerParams(
            dimension_semantics=("parallel", "arbitrary"),
            vmem_limit_bytes=32 * 1024 * 1024,
        ),
    )(pred2d, gt2d, valid2d)

    # Single cheap cross-lane reduction outside the hot loop.
    return jnp.sum(partials) / denom


def _reference(pred, gt, valid, threshold=400):
    # Pure-JAX reference mirroring the PyTorch forward.
    dimension = pred.shape[-1]
    diff = (gt.astype(jnp.float32) - pred.astype(jnp.float32)) ** 2 * valid
    thr = float(threshold)
    diff = jnp.where(diff > thr, jnp.power(diff, 0.1) * thr ** 0.9, diff)
    return jnp.sum(diff) / (dimension * jnp.maximum(1.0, jnp.sum(valid)))


if __name__ == "__main__":
    loss_fn = jax.jit(keypoints_mse_smooth_loss,
                      static_argnames=("threshold", "max_tile_rows"))

    keys = jax.random.split(jax.random.PRNGKey(0), 6)

    # Case 1: module-scale small input (tiny pad path, single tile).
    batch, n_joints, dim = 2, 16, 3
    pred = 30.0 * jax.random.normal(keys[0], (batch, n_joints, dim), jnp.float32)
    gt = 30.0 * jax.random.normal(keys[1], (batch, n_joints, dim), jnp.float32)
    valid = (jax.random.uniform(keys[2], (batch, n_joints, 1)) > 0.3
             ).astype(jnp.float32)
    loss = jax.block_until_ready(loss_fn(pred, gt, valid))
    ref = _reference(pred, gt, valid)
    assert jnp.allclose(loss, ref, rtol=1e-4, atol=1e-5), (loss, ref)

    # Case 2: copy-free slab (total % (8*LANES) == 0), multi-tile grid with a
    # 2-way "parallel" split and a masked, clamped duplicate last tile.
    batch, n_joints, dim = 32, 512, 3          # 49152 elems -> 96 rows of 512
    pred = 30.0 * jax.random.normal(keys[3], (batch, n_joints, dim), jnp.float32)
    gt = 30.0 * jax.random.normal(keys[4], (batch, n_joints, dim), jnp.float32)
    valid = (jax.random.uniform(keys[5], (batch, n_joints, 1)) > 0.3
             ).astype(jnp.float32)
    loss = jax.block_until_ready(loss_fn(pred, gt, valid, max_tile_rows=32))
    ref = _reference(pred, gt, valid)
    assert jnp.allclose(loss, ref, rtol=1e-4, atol=1e-5), (loss, ref)

    print("KERNEL_OK")
</pallas_src>

<mosaic_0001>
module attributes {stable_mosaic.version = 11 : i64} {
  func.func @_kps_mse_smooth_kernel(%arg0: i32, %arg1: i32, %arg2: memref<8x512xf32, #tpu.memory_space<vmem>>, %arg3: memref<8x512xf32, #tpu.memory_space<vmem>>, %arg4: memref<8x512xi8, #tpu.memory_space<vmem>>, %arg5: memref<8x512xf32, #tpu.memory_space<vmem>>) attributes {dimension_semantics = [#tpu.dimension_semantics<parallel>, #tpu.dimension_semantics<arbitrary>], iteration_bounds = array<i64: 1, 1>, scalar_prefetch = 0 : i64, scratch_operands = 0 : i64, tpu.core_type = #tpu.core_type<tc>, window_params = [{transform_indices = @transform_0, window_bounds = array<i64: 8, 512>}, {transform_indices = @transform_1, window_bounds = array<i64: 8, 512>}, {transform_indices = @transform_2, window_bounds = array<i64: 8, 512>}, {transform_indices = @transform_3, window_bounds = array<i64: 8, 512>}]} {
    %c0_i32 = arith.constant 0 : i32
    %0 = arith.cmpi eq, %arg1, %c0_i32 : i32
    %1 = arith.extui %0 : i1 to i32
    %c0_i32_0 = arith.constant 0 : i32
    %2 = arith.cmpi ne, %1, %c0_i32_0 : i32
    scf.if %2 {
      %cst_14 = arith.constant 0.000000e+00 : f32
      %24 = vector.broadcast %cst_14 : f32 to vector<8x512xf32>
      %c0_15 = arith.constant 0 : index
      %c0_16 = arith.constant 0 : index
      %25 = vector.load %arg5[%c0_15, %c0_16] : memref<8x512xf32, #tpu.memory_space<vmem>>, vector<8x512xf32>
      tpu.vector_store %arg5[%c0_15, %c0_16], %24 {strides = array<i32>} : memref<8x512xf32, #tpu.memory_space<vmem>>, vector<8x512xf32>,
    } else {
    }
    %c0 = arith.constant 0 : index
    %c0_1 = arith.constant 0 : index
    %3 = vector.load %arg2[%c0, %c0_1] : memref<8x512xf32, #tpu.memory_space<vmem>>, vector<8x512xf32>
    %c0_2 = arith.constant 0 : index
    %c0_3 = arith.constant 0 : index
    %4 = vector.load %arg3[%c0_2, %c0_3] : memref<8x512xf32, #tpu.memory_space<vmem>>, vector<8x512xf32>
    %c0_4 = arith.constant 0 : index
    %c0_5 = arith.constant 0 : index
    %5 = vector.load %arg4[%c0_4, %c0_5] : memref<8x512xi8, #tpu.memory_space<vmem>>, vector<8x512xi8>
    %6 = arith.sitofp %5 : vector<8x512xi8> to vector<8x512xf32>
    %7 = arith.subf %4, %3 : vector<8x512xf32>
    %8 = arith.mulf %7, %7 : vector<8x512xf32>
    %9 = arith.mulf %8, %6 : vector<8x512xf32>
    %cst = arith.constant 4.000000e+02 : f32
    %10 = vector.broadcast %cst : f32 to vector<8x512xf32>
    %11 = arith.cmpf ogt, %9, %10 : vector<8x512xf32>
    %cst_6 = arith.constant 4.000000e+02 : f32
    %12 = vector.broadcast %cst_6 : f32 to vector<8x512xf32>
    %13 = arith.maximumf %9, %12 : vector<8x512xf32>
    %cst_7 = arith.constant 1.000000e-01 : f32
    %14 = vector.broadcast %cst_7 : f32 to vector<8x512xf32>
    %15 = math.powf %13, %14 : vector<8x512xf32>
    %cst_8 = arith.constant 219.712112 : f32
    %16 = vector.broadcast %cst_8 : f32 to vector<8x512xf32>
    %17 = arith.mulf %15, %16 : vector<8x512xf32>
    %18 = arith.select %11, %17, %9 : vector<8x512xi1>, vector<8x512xf32>
    %c0_9 = arith.constant 0 : index
    %c0_10 = arith.constant 0 : index
    %19 = vector.load %arg5[%c0_9, %c0_10] : memref<8x512xf32, #tpu.memory_space<vmem>>, vector<8x512xf32>
    %20 = vector.shape_cast %18 : vector<8x512xf32> to vector<1x8x512xf32>
    %cst_11 = arith.constant dense<0.000000e+00> : vector<8x512xf32>
    %21 = vector.multi_reduction <add>, %20, %cst_11 [0] : vector<1x8x512xf32> to vector<8x512xf32>
    %22 = arith.addf %19, %21 : vector<8x512xf32>
    %c0_12 = arith.constant 0 : index
    %c0_13 = arith.constant 0 : index
    %23 = vector.load %arg5[%c0_12, %c0_13] : memref<8x512xf32, #tpu.memory_space<vmem>>, vector<8x512xf32>
    tpu.vector_store %arg5[%c0_12, %c0_13], %22 {strides = array<i32>} : memref<8x512xf32, #tpu.memory_space<vmem>>, vector<8x512xf32>,
    return
  }
  func.func @transform_0(%arg0: i32, %arg1: i32) -> (i32, i32) {
    %c1_i32 = arith.constant 1 : i32
    %0 = arith.muli %arg0, %c1_i32 : i32
    %1 = arith.addi %0, %arg1 : i32
    %c0_i32 = arith.constant 0 : i32
    %2 = arith.minsi %1, %c0_i32 : i32
    %c0_i32_0 = arith.constant 0 : i32
    %c0_i32_1 = arith.constant 0 : i32
    return %2, %c0_i32_0 : i32, i32
  }
  func.func @transform_1(%arg0: i32, %arg1: i32) -> (i32, i32) {
    %c1_i32 = arith.constant 1 : i32
    %0 = arith.muli %arg0, %c1_i32 : i32
    %1 = arith.addi %0, %arg1 : i32
    %c0_i32 = arith.constant 0 : i32
    %2 = arith.minsi %1, %c0_i32 : i32
    %c0_i32_0 = arith.constant 0 : i32
    %c0_i32_1 = arith.constant 0 : i32
    return %2, %c0_i32_0 : i32, i32
  }
  func.func @transform_2(%arg0: i32, %arg1: i32) -> (i32, i32) {
    %c1_i32 = arith.constant 1 : i32
    %0 = arith.muli %arg0, %c1_i32 : i32
    %1 = arith.addi %0, %arg1 : i32
    %c0_i32 = arith.constant 0 : i32
    %2 = arith.minsi %1, %c0_i32 : i32
    %c0_i32_0 = arith.constant 0 : i32
    %c0_i32_1 = arith.constant 0 : i32
    return %2, %c0_i32_0 : i32, i32
  }
  func.func @transform_3(%arg0: i32, %arg1: i32) -> (i32, i32) {
    %c0_i32 = arith.constant 0 : i32
    %c0_i32_0 = arith.constant 0 : i32
    return %arg0, %c0_i32 : i32, i32
  }
}

</mosaic_0001>

<llo_original>
// kernel: keypoints_mse_smooth_loss.1
$region0: #{keypoints_mse_smooth_loss.1}
  #allocation0 [shape = 'u32[]', space=smem, size = 0x4, offset = 0x4, fixed_abs, tag = 'smem constant byte address 0x4 - core index']
  #allocation1 [shape = 'u32[72,128]{1,0:T(1,128)}', space=vmem, size = 0x9000, scoped, tag = 'internal scratch']
  %s0 = inlined_call_operand.vmem [shape: f32[8,512], index: 0, kind: input, shape index: {}]
  %s1 = inlined_call_operand.vmem [shape: f32[8,512], index: 1, kind: input, shape index: {}]
  %s2 = inlined_call_operand.vmem [shape: s8[8,512], index: 2, kind: input, shape index: {}]
  %s3 = inlined_call_operand.vmem [shape: f32[8,512], index: 3, kind: output, shape index: {}]
  %s4 = sld [smem:[#allocation0]]
  $region26: #{keypoints_mse_smooth_loss.1} parent=0
    _
  %s6 = ssub.s32 1, %s4
  %s7 = scalar_select 0, %s6, %s4
  // Predicated region
  $region2: #{keypoints_mse_smooth_loss.1} parent=0 // pred_check
    _
  $region3: #{keypoints_mse_smooth_loss.1} parent=0 // pred_check_branch
    %9 = sbr.rel (0) target = $region5
  $region4: #{keypoints_mse_smooth_loss.1} parent=0 // pred_region
    %s10 = sadd.s32 0, 0
    %p11 = scmp.lt.s32.totalorder %s10, 0
    %s12 = scalar_select %p11, %s10, 0
    %p13 = scmp.lt.s32.totalorder %s12, 0
    %s14 = scalar_select %p13, %s12, 0
    %s15 = smul.addr %s14, 4
    %s16 = smul.addr %s15, 8
    %s17 = scalar_lea.vmem %s0, %s16
    %s18 = sadd.s32 0, 0
    %p19 = scmp.lt.s32.totalorder %s18, 0
    %s20 = scalar_select %p19, %s18, 0
  $region5: #{keypoints_mse_smooth_loss.1} parent=0 // pred_fallthru
    _
  // Predicated region
  $region6: #{keypoints_mse_smooth_loss.1} parent=0 // pred_check
    _
  $region7: #{keypoints_mse_smooth_loss.1} parent=0 // pred_check_branch
    %22 = sbr.rel (0) target = $region9
  $region8: #{keypoints_mse_smooth_loss.1} parent=0 // pred_region
    %s23 = sadd.s32 0, 0
    %p24 = scmp.lt.s32.totalorder %s23, 0
    %s25 = scalar_select %p24, %s23, 0
    %p26 = scmp.lt.s32.totalorder %s25, 0
    %s27 = scalar_select %p26, %s25, 0
    %s28 = smul.addr %s27, 4
    %s29 = smul.addr %s28, 8
    %s30 = scalar_lea.vmem %s1, %s29
    %s31 = sadd.s32 0, 0
    %p32 = scmp.lt.s32.totalorder %s31, 0
    %s33 = scalar_select %p32, %s31, 0
  $region9: #{keypoints_mse_smooth_loss.1} parent=0 // pred_fallthru
    _
  // Predicated region
  $region10: #{keypoints_mse_smooth_loss.1} parent=0 // pred_check
    _
  $region11: #{keypoints_mse_smooth_loss.1} parent=0 // pred_check_branch
    %35 = sbr.rel (0) target = $region13
  $region12: #{keypoints_mse_smooth_loss.1} parent=0 // pred_region
    %s36 = sadd.s32 0, 0
    %p37 = scmp.lt.s32.totalorder %s36, 0
    %s38 = scalar_select %p37, %s36, 0
    %p39 = scmp.lt.s32.totalorder %s38, 0
    %s40 = scalar_select %p39, %s38, 0
    %s41 = smul.addr %s40, 4
    %s42 = smul.addr %s41, 2
    %s43 = scalar_lea.vmem %s2, %s42
    %s44 = sadd.s32 0, 0
    %p45 = scmp.lt.s32.totalorder %s44, 0
    %s46 = scalar_select %p45, %s44, 0
  $region13: #{keypoints_mse_smooth_loss.1} parent=0 // pred_fallthru
    _
  %s47 = sadd.s32 0, 0
  %p48 = scmp.lt.s32.totalorder %s47, 0
  %s49 = scalar_select %p48, %s47, 0
  %p50 = scmp.lt.s32.totalorder %s49, 0
  %s51 = scalar_select %p50, %s49, 0
  %s52 = smul.addr %s51, 4
  %s53 = smul.addr %s52, 8
  %s54 = scalar_lea.vmem %s0, %s53
  %s55 = sadd.s32 0, 0
  %p56 = scmp.lt.s32.totalorder %s55, 0
  %s57 = scalar_select %p56, %s55, 0
  %p58 = scmp.lt.s32.totalorder %s57, 0
  %s59 = scalar_select %p58, %s57, 0
  %s60 = smul.addr %s59, 4
  %s61 = smul.addr %s60, 8
  %s62 = scalar_lea.vmem %s1, %s61
  %s63 = sadd.s32 0, 0
  %p64 = scmp.lt.s32.totalorder %s63, 0
  %s65 = scalar_select %p64, %s63, 0
  %p66 = scmp.lt.s32.totalorder %s65, 0
  %s67 = scalar_select %p66, %s65, 0
  %s68 = smul.addr %s67, 4
  %s69 = smul.addr %s68, 2
  %s70 = scalar_lea.vmem %s2, %s69
  %s71 = sadd.s32 0, 0
  %p72 = scmp.lt.s32.totalorder %s71, 0
  %s73 = scalar_select %p72, %s71, 0
  %p74 = scmp.lt.s32.totalorder %s73, 0
  %s75 = scalar_select %p74, %s73, 0
  %s76 = smul.addr %s75, 4
  %s77 = smul.addr %s76, 8
  %s78 = scalar_lea.vmem %s0, %s77
  %s79 = sadd.s32 0, 0
  %p80 = scmp.lt.s32.totalorder %s79, 0
  %s81 = scalar_select %p80, %s79, 0
  %s82 = sadd.s32 0, 0
  %p83 = scmp.lt.s32.totalorder %s82, 0
  %s84 = scalar_select %p83, %s82, 0
  %p85 = scmp.lt.s32.totalorder %s84, 0
  %s86 = scalar_select %p85, %s84, 0
  %s87 = smul.addr %s86, 4
  %s88 = smul.addr %s87, 8
  %s89 = scalar_lea.vmem %s1, %s88
  %s90 = sadd.s32 0, 0
  %p91 = scmp.lt.s32.totalorder %s90, 0
  %s92 = scalar_select %p91, %s90, 0
  %s93 = sadd.s32 0, 0
  %p94 = scmp.lt.s32.totalorder %s93, 0
  %s95 = scalar_select %p94, %s93, 0
  %p96 = scmp.lt.s32.totalorder %s95, 0
  %s97 = scalar_select %p96, %s95, 0
  %s98 = smul.addr %s97, 4
  %s99 = smul.addr %s98, 2
  %s100 = scalar_lea.vmem %s2, %s99
  %s101 = sadd.s32 0, 0
  %p102 = scmp.lt.s32.totalorder %s101, 0
  %s103 = scalar_select %p102, %s101, 0
  %p104 = scmp.eq.s32.totalorder 0, 0
  // Predicated region
  $region14: #{keypoints_mse_smooth_loss.1} parent=0 // pred_check
    %p105 = pneg %p104
  $region15: #{keypoints_mse_smooth_loss.1} parent=0 // pred_check_branch
    %107 = sbr.rel (%p105) target = $region17
  $region16: #{keypoints_mse_smooth_loss.1} parent=0 // pred_region
    %108 = vst [vmem:[%s3] sm:$0xff] 0.0
    %109 = vst [vmem:[%s3 + $0x8] sm:$0xff] 0.0
    %110 = vst [vmem:[%s3 + $0x10] sm:$0xff] 0.0
    %111 = vst [vmem:[%s3 + $0x18] sm:$0xff] 0.0
  $region17: #{keypoints_mse_smooth_loss.1} parent=0 // pred_fallthru
    _
  %v112 = vld [vmem:[%s78] sm:$0xff]
  %v113 = vld [vmem:[%s78 + $0x8] sm:$0xff]
  %v114 = vld [vmem:[%s78 + $0x10] sm:$0xff]
  %v115 = vld [vmem:[%s78 + $0x18] sm:$0xff]
  %v116 = vld [vmem:[%s89] sm:$0xff]
  %v117 = vld [vmem:[%s89 + $0x8] sm:$0xff]
  %v118 = vld [vmem:[%s89 + $0x10] sm:$0xff]
  %v119 = vld [vmem:[%s89 + $0x18] sm:$0xff]
  %v120 = vld [vmem:[%s100] sm:$0xff]
  %v121 = vunpack.c.0.s8 %v120
  %v122 = vunpack.c.1.s8 %v120
  %v123 = vunpack.c.2.s8 %v120
  %v124 = vunpack.c.3.s8 %v120
  %v125 = vcvt.s32.f32 %v121
  %v126 = vcvt.s32.f32 %v122
  %v127 = vcvt.s32.f32 %v123
  %v128 = vcvt.s32.f32 %v124
  %v129 = vsub.f32 %v116, %v112
  %v130 = vsub.f32 %v117, %v113
  %v131 = vsub.f32 %v118, %v114
  %v132 = vsub.f32 %v119, %v115
  %v133 = vmul.f32 %v129, %v129
  %v134 = vmul.f32 %v130, %v130
  %v135 = vmul.f32 %v131, %v131
  %v136 = vmul.f32 %v132, %v132
  %v137 = vmul.f32 %v133, %v125
  %v138 = vmul.f32 %v134, %v126
  %v139 = vmul.f32 %v135, %v127
  %v140 = vmul.f32 %v136, %v128
  %vm141 = vcmp.gt.f32.partialorder %v137, 400.0
  %vm142 = vcmp.gt.f32.partialorder %v138, 400.0
  %vm143 = vcmp.gt.f32.partialorder %v139, 400.0
  %vm144 = vcmp.gt.f32.partialorder %v140, 400.0
  %v145 = vmax.f32 %v137, 400.0
  %v146 = vmax.f32 %v138, 400.0
  %v147 = vmax.f32 %v139, 400.0
  %v148 = vmax.f32 %v140, 400.0
  %v149 = vpow.f32 %v145, 0.1
  %v150 = vpow.f32 %v146, 0.1
  %v151 = vpow.f32 %v147, 0.1
  %v152 = vpow.f32 %v148, 0.1
  %v153 = vmul.f32 %v149, 219.71211
  %v154 = vmul.f32 %v150, 219.71211
  %v155 = vmul.f32 %v151, 219.71211
  %v156 = vmul.f32 %v152, 219.71211
  %v157 = vsel %vm141, %v153, %v137
  %v158 = vsel %vm142, %v154, %v138
  %v159 = vsel %vm143, %v155, %v139
  %v160 = vsel %vm144, %v156, %v140
  %v161 = vld [vmem:[%s3] sm:$0xff]
  %v162 = vld [vmem:[%s3 + $0x8] sm:$0xff]
  %v163 = vld [vmem:[%s3 + $0x10] sm:$0xff]
  %v164 = vld [vmem:[%s3 + $0x18] sm:$0xff]
  %v165 = vadd.f32 %v157, 0.0
  %v166 = vadd.f32 %v158, 0.0
  %v167 = vadd.f32 %v159, 0.0
  %v168 = vadd.f32 %v160, 0.0
  %v169 = vadd.f32 %v161, %v165
  %v170 = vadd.f32 %v162, %v166
  %v171 = vadd.f32 %v163, %v167
  %v172 = vadd.f32 %v164, %v168
  %173 = vst [vmem:[%s3] sm:$0xff] %v169
  %174 = vst [vmem:[%s3 + $0x8] sm:$0xff] %v170
  %175 = vst [vmem:[%s3 + $0x10] sm:$0xff] %v171
  %176 = vst [vmem:[%s3 + $0x18] sm:$0xff] %v172
  // Predicated region
  $region18: #{keypoints_mse_smooth_loss.1} parent=0 // pred_check
    _
  $region19: #{keypoints_mse_smooth_loss.1} parent=0 // pred_check_branch
    %178 = sbr.rel (0) target = $region21
  $region20: #{keypoints_mse_smooth_loss.1} parent=0 // pred_region
    _
  $region21: #{keypoints_mse_smooth_loss.1} parent=0 // pred_fallthru
    _
  // Predicated region
  $region22: #{keypoints_mse_smooth_loss.1} parent=0 // pred_check
    _
  $region23: #{keypoints_mse_smooth_loss.1} parent=0 // pred_check_branch
    %180 = sbr.rel (0) target = $region25
  $region24: #{keypoints_mse_smooth_loss.1} parent=0 // pred_region
    _
  $region25: #{keypoints_mse_smooth_loss.1} parent=0 // pred_fallthru
    _

</llo_original>
